<compile_context>
chip_gen: v5e
topology: v5e:2x2
jax: 0.10.0
libtpu: 0.0.40
codegen_flags: <defaults>
</compile_context>

<pallas_src>
import jax
import jax.numpy as jnp
from jax.experimental import pallas as pl
from jax.experimental.pallas import tpu as pltpu


def _round_up(n, m):
    return ((n + m - 1) // m) * m


def _pick_batch_tile(B, batch_tile):
    """Multiple-of-8 batch tile; for small B aim for ~8 grid steps (~4 per TC on v7x)."""
    if B < 8:
        return B
    tb = min(batch_tile, B)
    if B // tb < 8 and B >= 64:
        tb = (B // 8) & ~7          # ~B/8, rounded down to a multiple of 8
    return max(8, tb & ~7)


def lca_kernel(xcat_ref, wf_ref, b_ref, w2_ref, out_ref):
    """One batch tile.  Output slab layout (single 128-lane, unmasked store):
         [0        : a1)        abs1  = tau_1(act1)
         [a1       : 2*a1)      pred1 = Linear1(inputs)
         [2*a1     : 2*a1+a2)   abs2  = tau_2(act2)
         [2*a1+a2  : 2*a1+2*a2) pred2 = Linear2(ReLU(abs1))
         [..       : 128)       zero padding
    """
    # Block-diagonal fused matmul: abs1 | pred1 | abs2 in one MXU push (K=160).
    # In bf16 mode only the operand cast happens here (tile already in VMEM); accum is f32.
    xc = xcat_ref[...].astype(wf_ref.dtype)
    fused = jnp.dot(xc, wf_ref[...], preferred_element_type=jnp.float32) + b_ref[...]
    # ReLU on the whole 128-lane slab is fine: w2_ref has nonzero rows only for abs1's
    # lanes, so pred1/abs2/b2 lanes contribute nothing to the second matmul.
    h = jnp.maximum(fused, 0.0).astype(w2_ref.dtype)
    # Second matmul lands in pred2's lane range (fused already holds b2 there, zeros
    # elsewhere in that range), so one full-width store finishes the tile.
    out_ref[...] = (fused
                    + jnp.dot(h, w2_ref[...], preferred_element_type=jnp.float32)
                    ).astype(out_ref.dtype)


def locally_consistent_abstraction(inputs, activations, params, *,
                                   batch_tile=512, use_bf16_weights=False):
    """Fused Pallas forward.

    inputs:       (B, in_dim)  f32
    activations:  {"layers.0.output": (B, d1_full), "layers.2.output": (B, d2_full)}
    params:       pre-transposed weights (in, out) and biases (1, out), f32
    returns (abstractions, predicted_abstractions) dicts matching the PyTorch module.
    """
    act1 = activations["layers.0.output"]
    act2 = activations["layers.2.output"]
    B, in_dim = inputs.shape
    d1 = act1.shape[1]
    d2 = act2.shape[1]
    a1 = params["wt1"].shape[1]
    a2 = params["wt2"].shape[1]
    slab_w = _round_up(2 * a1 + 2 * a2, 128)   # 128 for a1=32, a2=16
    K = d1 + in_dim + d2

    # --- parameter packing (tiny, weight-only; in a real pipeline do this once at load) ---
    wdt = jnp.bfloat16 if use_bf16_weights else jnp.float32
    wf = jnp.zeros((K, slab_w), jnp.float32)
    wf = wf.at[0:d1, 0:a1].set(params["wt1"])
    wf = wf.at[d1:d1 + in_dim, a1:2 * a1].set(params["w1"])
    wf = wf.at[d1 + in_dim:K, 2 * a1:2 * a1 + a2].set(params["wt2"])
    wf = wf.astype(wdt)

    b_all = jnp.zeros((1, slab_w), jnp.float32)
    b_all = b_all.at[:, 0:a1].set(params["bt1"])
    b_all = b_all.at[:, a1:2 * a1].set(params["b1"])
    b_all = b_all.at[:, 2 * a1:2 * a1 + a2].set(params["bt2"])
    b_all = b_all.at[:, 2 * a1 + a2:2 * a1 + 2 * a2].set(params["b2"])

    w2p = jnp.zeros((slab_w, slab_w), jnp.float32)
    w2p = w2p.at[0:a1, 2 * a1 + a2:2 * a1 + 2 * a2].set(params["w2"])
    w2p = w2p.astype(wdt)

    # Lane-dense concatenated activation stream (one DMA stream instead of three
    # sub-128-lane ones; feeds a single K=160 MXU push).
    xcat = jnp.concatenate([act1, inputs, act2], axis=1)

    tb = _pick_batch_tile(B, batch_tile)
    grid = (pl.cdiv(B, tb),)

    batch_map = lambda i: (i, 0)    # activation slab / output: walk the batch axis
    const_map = lambda i: (0, 0)    # weights / bias: same block every step (stay resident)

    slab = pl.pallas_call(
        lca_kernel,
        out_shape=jax.ShapeDtypeStruct((B, slab_w), jnp.float32),
        grid_spec=pl.GridSpec(
            grid=grid,
            in_specs=[
                pl.BlockSpec((tb, K), batch_map),
                pl.BlockSpec(wf.shape, const_map),
                pl.BlockSpec(b_all.shape, const_map),
                pl.BlockSpec(w2p.shape, const_map),
            ],
            out_specs=pl.BlockSpec((tb, slab_w), batch_map),
        ),
        compiler_params=pltpu.CompilerParams(
            dimension_semantics=("parallel",),   # shard batch tiles across v7x's 2 TCs
            vmem_limit_bytes=32 * 1024 * 1024,   # generous; footprint is ~2 MiB at tb=512
        ),
    )(xcat, wf, b_all, w2p)

    # Tight-slab slices (128 lanes, ~75% useful). If the consumer (e.g. l2_loss) is jitted
    # together with this wrapper, XLA fuses these slices into its computation.
    abs1 = slab[:, 0:a1]
    pred1 = slab[:, a1:2 * a1]
    abs2 = slab[:, 2 * a1:2 * a1 + a2]
    pred2 = slab[:, 2 * a1 + a2:2 * a1 + 2 * a2]

    abstractions = {"layers.0.output": abs1, "layers.2.output": abs2}
    predicted_abstractions = {"layers.0.output": pred1, "layers.2.output": pred2}
    return abstractions, predicted_abstractions


def _reference(inputs, activations, params):
    """Pure-JAX reference mirroring the PyTorch hook semantics."""
    abs1 = activations["layers.0.output"] @ params["wt1"] + params["bt1"]
    abs2 = activations["layers.2.output"] @ params["wt2"] + params["bt2"]
    pred1 = inputs @ params["w1"] + params["b1"]
    pred2 = jnp.maximum(abs1, 0.0) @ params["w2"] + params["b2"]
    return ({"layers.0.output": abs1, "layers.2.output": abs2},
            {"layers.0.output": pred1, "layers.2.output": pred2})


def _make_case(key, B, in_dim, d1_full, d2_full, a1, a2):
    ks = jax.random.split(key, 11)
    inputs = jax.random.normal(ks[0], (B, in_dim), jnp.float32)
    activations = {
        "layers.0.output": jax.random.normal(ks[1], (B, d1_full), jnp.float32),
        "layers.2.output": jax.random.normal(ks[2], (B, d2_full), jnp.float32),
    }
    scale = 0.1
    # PyTorch Linear weight is (out, in); we store the transpose (in, out) so the kernel
    # computes x @ W + b directly.
    params = {
        "wt1": scale * jax.random.normal(ks[3], (d1_full, a1), jnp.float32),
        "bt1": scale * jax.random.normal(ks[4], (1, a1), jnp.float32),
        "wt2": scale * jax.random.normal(ks[5], (d2_full, a2), jnp.float32),
        "bt2": scale * jax.random.normal(ks[6], (1, a2), jnp.float32),
        "w1": scale * jax.random.normal(ks[7], (in_dim, a1), jnp.float32),
        "b1": scale * jax.random.normal(ks[8], (1, a1), jnp.float32),
        "w2": scale * jax.random.normal(ks[9], (a1, a2), jnp.float32),
        "b2": scale * jax.random.normal(ks[10], (1, a2), jnp.float32),
    }
    return inputs, activations, params


if __name__ == "__main__":
    # Small shapes consistent with the module's forward; B chosen so the auto-shrunk batch
    # tile (tb=64) gives an 8-step pipelined / parallel grid.
    in_dim, d1_full, d2_full, a1, a2 = 32, 64, 64, 32, 16
    key = jax.random.PRNGKey(0)
    k_a, k_b = jax.random.split(key)

    # TODO(synk): the trailing Linear3 of the abstract model runs in PyTorch but its output
    # is never returned/captured, so it is omitted here (pure dead code).

    # --- case 1: B=512, f32 weights (tight tolerance) ---
    inputs, activations, params = _make_case(k_a, 512, in_dim, d1_full, d2_full, a1, a2)
    ref_abs, ref_pred = _reference(inputs, activations, params)
    abstractions, predicted = locally_consistent_abstraction(
        inputs, activations, params, use_bf16_weights=False)
    jax.block_until_ready((abstractions, predicted))
    for name in abstractions:
        assert jnp.allclose(abstractions[name], ref_abs[name], atol=1e-5, rtol=1e-5)
        assert jnp.allclose(predicted[name], ref_pred[name], atol=1e-5, rtol=1e-5)

    # --- case 1b: bf16-weight perf mode (f32 activations / accumulation / elementwise) ---
    abstractions_bf, predicted_bf = locally_consistent_abstraction(
        inputs, activations, params, use_bf16_weights=True)
    jax.block_until_ready((abstractions_bf, predicted_bf))
    for name in abstractions_bf:
        assert jnp.allclose(abstractions_bf[name], ref_abs[name], atol=5e-2, rtol=5e-2)
        assert jnp.allclose(predicted_bf[name], ref_pred[name], atol=5e-2, rtol=5e-2)

    # --- case 2: ragged last batch tile (B=200 not a multiple of tb=24) ---
    inputs2, activations2, params2 = _make_case(k_b, 200, in_dim, d1_full, d2_full, a1, a2)
    ref_abs2, ref_pred2 = _reference(inputs2, activations2, params2)
    abstractions2, predicted2 = locally_consistent_abstraction(
        inputs2, activations2, params2, use_bf16_weights=False)
    jax.block_until_ready((abstractions2, predicted2))
    for name in abstractions2:
        assert jnp.allclose(abstractions2[name], ref_abs2[name], atol=1e-5, rtol=1e-5)
        assert jnp.allclose(predicted2[name], ref_pred2[name], atol=1e-5, rtol=1e-5)

    print("KERNEL_OK")
</pallas_src>

<mosaic_0001>
module attributes {stable_mosaic.version = 11 : i64} {
  func.func @lca_kernel(%arg0: i32, %arg1: memref<64x160xf32, #tpu.memory_space<vmem>>, %arg2: memref<160x128xf32, #tpu.memory_space<vmem>>, %arg3: memref<1x128xf32, #tpu.memory_space<vmem>>, %arg4: memref<128x128xf32, #tpu.memory_space<vmem>>, %arg5: memref<64x128xf32, #tpu.memory_space<vmem>>) attributes {dimension_semantics = [#tpu.dimension_semantics<parallel>], iteration_bounds = array<i64: 8>, scalar_prefetch = 0 : i64, scratch_operands = 0 : i64, tpu.core_type = #tpu.core_type<tc>, window_params = [{transform_indices = @transform_0, window_bounds = array<i64: 64, 160>}, {pipeline_mode = #tpu.pipeline_mode<synchronous>, transform_indices = @transform_1, window_bounds = array<i64: 160, 128>}, {pipeline_mode = #tpu.pipeline_mode<synchronous>, transform_indices = @transform_2, window_bounds = array<i64: 1, 128>}, {pipeline_mode = #tpu.pipeline_mode<synchronous>, transform_indices = @transform_3, window_bounds = array<i64: 128, 128>}, {transform_indices = @transform_4, window_bounds = array<i64: 64, 128>}]} {
    %c0 = arith.constant 0 : index
    %c0_0 = arith.constant 0 : index
    %0 = vector.load %arg1[%c0, %c0_0] : memref<64x160xf32, #tpu.memory_space<vmem>>, vector<64x160xf32>
    %c0_1 = arith.constant 0 : index
    %c0_2 = arith.constant 0 : index
    %1 = vector.load %arg2[%c0_1, %c0_2] : memref<160x128xf32, #tpu.memory_space<vmem>>, vector<160x128xf32>
    %cst = arith.constant dense<0.000000e+00> : vector<64x128xf32>
    %2 = tpu.matmul %0, %1, %cst {dimension_numbers = #tpu.dot_dimension_numbers<[1], [0], [0], [1], [0, 0, 1, 1], [], []>} : vector<64x160xf32>, vector<160x128xf32>, vector<64x128xf32> -> vector<64x128xf32>
    %c0_3 = arith.constant 0 : index
    %c0_4 = arith.constant 0 : index
    %3 = vector.load %arg3[%c0_3, %c0_4] : memref<1x128xf32, #tpu.memory_space<vmem>>, vector<1x128xf32>
    %4 = vector.broadcast %3 : vector<1x128xf32> to vector<64x128xf32>
    %5 = arith.addf %2, %4 : vector<64x128xf32>
    %cst_5 = arith.constant 0.000000e+00 : f32
    %6 = vector.broadcast %cst_5 : f32 to vector<64x128xf32>
    %7 = arith.maximumf %5, %6 : vector<64x128xf32>
    %c0_6 = arith.constant 0 : index
    %c0_7 = arith.constant 0 : index
    %8 = vector.load %arg4[%c0_6, %c0_7] : memref<128x128xf32, #tpu.memory_space<vmem>>, vector<128x128xf32>
    %cst_8 = arith.constant dense<0.000000e+00> : vector<64x128xf32>
    %9 = tpu.matmul %7, %8, %cst_8 {dimension_numbers = #tpu.dot_dimension_numbers<[1], [0], [0], [1], [0, 0, 1, 1], [], []>} : vector<64x128xf32>, vector<128x128xf32>, vector<64x128xf32> -> vector<64x128xf32>
    %10 = arith.addf %5, %9 : vector<64x128xf32>
    %c0_9 = arith.constant 0 : index
    %c0_10 = arith.constant 0 : index
    %11 = vector.load %arg5[%c0_9, %c0_10] : memref<64x128xf32, #tpu.memory_space<vmem>>, vector<64x128xf32>
    tpu.vector_store %arg5[%c0_9, %c0_10], %10 {strides = array<i32>} : memref<64x128xf32, #tpu.memory_space<vmem>>, vector<64x128xf32>,
    return
  }
  func.func @transform_0(%arg0: i32) -> (i32, i32) {
    %c0_i32 = arith.constant 0 : i32
    %c0_i32_0 = arith.constant 0 : i32
    return %arg0, %c0_i32 : i32, i32
  }
  func.func @transform_1(%arg0: i32) -> (i32, i32) {
    %c0_i32 = arith.constant 0 : i32
    %c0_i32_0 = arith.constant 0 : i32
    %c0_i32_1 = arith.constant 0 : i32
    return %c0_i32, %c0_i32_0 : i32, i32
  }
  func.func @transform_2(%arg0: i32) -> (i32, i32) {
    %c0_i32 = arith.constant 0 : i32
    %c0_i32_0 = arith.constant 0 : i32
    %c0_i32_1 = arith.constant 0 : i32
    return %c0_i32, %c0_i32_0 : i32, i32
  }
  func.func @transform_3(%arg0: i32) -> (i32, i32) {
    %c0_i32 = arith.constant 0 : i32
    %c0_i32_0 = arith.constant 0 : i32
    %c0_i32_1 = arith.constant 0 : i32
    return %c0_i32, %c0_i32_0 : i32, i32
  }
  func.func @transform_4(%arg0: i32) -> (i32, i32) {
    %c0_i32 = arith.constant 0 : i32
    %c0_i32_0 = arith.constant 0 : i32
    return %arg0, %c0_i32 : i32, i32
  }
}

</mosaic_0001>

<llo_original>
// kernel: tpu_custom_call.1
$region0: #{tpu_custom_call.1}
  #allocation0 [shape = 'u32[]', space=smem, size = 0x4, offset = 0x4, fixed_abs, tag = 'smem constant byte address 0x4 - core index']
  #allocation1 [shape = 'u32[72,128]{1,0:T(1,128)}', space=vmem, size = 0x9000, scoped, tag = 'internal scratch']
  %s0 = inlined_call_operand.vmem [shape: f32[512,160], index: 0, kind: input, shape index: {}]
  %s1 = inlined_call_operand.vmem [shape: f32[160,128], index: 1, kind: input, shape index: {}]
  %s2 = inlined_call_operand.vmem [shape: f32[1,128], index: 2, kind: input, shape index: {}]
  %s3 = inlined_call_operand.vmem [shape: f32[128,128], index: 3, kind: input, shape index: {}]
  %s4 = inlined_call_operand.hbm [shape: f32[512,128], index: 4, kind: output, shape index: {}]
  %s5 = sld [smem:[#allocation0]]
  $region49: #{tpu_custom_call.1} parent=0
    _
  %s7 = ssub.s32 1, %s5
  %s8 = scalar_select 0, %s7, %s5
  $region1: #{tpu_custom_call.1} parent=0
    #allocation2 [shape = 'u8[65536]{0}', space=vmem, size = 0x10000, scoped, tag = 'output window, operand 0']
    #allocation3 [shape = 's32[2]{0}', space=sflag, size = 0x8, scoped, tag = 'scoped memory for tpu_custom_call.1']
    %9 = vsyncpa [#allocation3], 0
    %s10 = scalar_lea.sflag [#allocation3], 1
    %11 = vsyncpa %s10, 0
    loop: start=0, step=1, limit=10
    $region2: #{tpu_custom_call.1} parent=1 // loop_pre_header
      _
    $region3: #{tpu_custom_call.1} parent=1 // loop_header
      %s13 = sphi 0, %s17
      %p14 = scmp.ge.s32.totalorder %s13, 10
      %s23 = sphi 0, %s25
      %s26 = sphi 0, %s23
      %s27 = sphi 0, %s26
      %s43 = sphi 0, %s27
      %s47 = sphi 0, %s47
      %s49 = sphi 0, %s47
      %s50 = sphi 0, %s49
      %s64 = sphi 0, %s50
      %s68 = sphi 0, %s68
      %s70 = sphi 0, %s68
      %s71 = sphi 0, %s70
      %s85 = sphi 0, %s71
      %s89 = sphi 0, %s89
      %s91 = sphi 0, %s89
      %s92 = sphi 0, %s91
      %s106 = sphi 0, %s92
      %s112 = sphi 0, %s114
      %s115 = sphi 0, %s112
      %s116 = sphi 0, %s115
      %s132 = sphi 0, %s116
    $region4: #{tpu_custom_call.1} parent=1 // loop_header_branch
      %16 = sbr.rel (%p14) target = $region8
    $region5: #{tpu_custom_call.1} parent=1 // loop_body
      %s18 = ssub.s32 %s13, 1
      %s19 = ssub.s32 %s13, 2
      %s20 = sadd.s32 %s13, 1
      %s21 = ssub.s32 %s13, %s20
      %p22 = scmp.eq.s32.totalorder %s21, 0
      %s24 = sadd.s32 %s23, 1
      %s25 = scalar_select %p22, %s23, %s24
      %p28 = pneg %p22
      %p29 = scmp.eq.s32.totalorder %s13, 7
      %p30 = por %p28, %p29
      %p31 = scmp.ne.s32.totalorder %s23, %s26
      %p32 = scmp.eq.s32.totalorder %s13, 0
      %p33 = por %p31, %p32
      %p34 = scmp.ne.s32.totalorder %s23, %s26
      %p35 = scmp.eq.s32.totalorder %s18, 7
      %p36 = por %p34, %p35
      %p37 = scmp.ne.s32.totalorder %s26, %s27
      %p38 = scmp.eq.s32.totalorder %s18, 0
      %p39 = por %p37, %p38
      %p40 = scmp.ne.s32.totalorder %s26, %s27
      %p41 = scmp.eq.s32.totalorder %s19, 7
      %p42 = por %p40, %p41
      %p44 = scmp.ne.s32.totalorder %s27, %s43
      %p45 = scmp.eq.s32.totalorder %s19, 0
      %p46 = por %p44, %p45
      %s48 = sadd.s32 %s47, 1
      %p51 = scmp.eq.s32.totalorder %s13, 7
      %p52 = scmp.ne.s32.totalorder %s47, %s49
      %p53 = scmp.eq.s32.totalorder %s13, 0
      %p54 = por %p52, %p53
      %p55 = scmp.ne.s32.totalorder %s47, %s49
      %p56 = scmp.eq.s32.totalorder %s18, 7
      %p57 = por %p55, %p56
      %p58 = scmp.ne.s32.totalorder %s49, %s50
      %p59 = scmp.eq.s32.totalorder %s18, 0
      %p60 = por %p58, %p59
      %p61 = scmp.ne.s32.totalorder %s49, %s50
      %p62 = scmp.eq.s32.totalorder %s19, 7
      %p63 = por %p61, %p62
      %p65 = scmp.ne.s32.totalorder %s50, %s64
      %p66 = scmp.eq.s32.totalorder %s19, 0
      %p67 = por %p65, %p66
      %s69 = sadd.s32 %s68, 1
      %p72 = scmp.eq.s32.totalorder %s13, 7
      %p73 = scmp.ne.s32.totalorder %s68, %s70
      %p74 = scmp.eq.s32.totalorder %s13, 0
      %p75 = por %p73, %p74
      %p76 = scmp.ne.s32.totalorder %s68, %s70
      %p77 = scmp.eq.s32.totalorder %s18, 7
      %p78 = por %p76, %p77
      %p79 = scmp.ne.s32.totalorder %s70, %s71
      %p80 = scmp.eq.s32.totalorder %s18, 0
      %p81 = por %p79, %p80
      %p82 = scmp.ne.s32.totalorder %s70, %s71
      %p83 = scmp.eq.s32.totalorder %s19, 7
      %p84 = por %p82, %p83
      %p86 = scmp.ne.s32.totalorder %s71, %s85
      %p87 = scmp.eq.s32.totalorder %s19, 0
      %p88 = por %p86, %p87
      %s90 = sadd.s32 %s89, 1
      %p93 = scmp.eq.s32.totalorder %s13, 7
      %p94 = scmp.ne.s32.totalorder %s89, %s91
      %p95 = scmp.eq.s32.totalorder %s13, 0
      %p96 = por %p94, %p95
      %p97 = scmp.ne.s32.totalorder %s89, %s91
      %p98 = scmp.eq.s32.totalorder %s18, 7
      %p99 = por %p97, %p98
      %p100 = scmp.ne.s32.totalorder %s91, %s92
      %p101 = scmp.eq.s32.totalorder %s18, 0
      %p102 = por %p100, %p101
      %p103 = scmp.ne.s32.totalorder %s91, %s92
      %p104 = scmp.eq.s32.totalorder %s19, 7
      %p105 = por %p103, %p104
      %p107 = scmp.ne.s32.totalorder %s92, %s106
      %p108 = scmp.eq.s32.totalorder %s19, 0
      %p109 = por %p107, %p108
      %s110 = ssub.s32 %s13, %s20
      %p111 = scmp.eq.s32.totalorder %s110, 0
      %s113 = sadd.s32 %s112, 1
      %s114 = scalar_select %p111, %s112, %s113
      %p117 = pneg %p111
      %p118 = scmp.eq.s32.totalorder %s13, 7
      %p119 = por %p117, %p118
      %p120 = scmp.ne.s32.totalorder %s112, %s115
      %p121 = scmp.eq.s32.totalorder %s13, 0
      %p122 = por %p120, %p121
      %p123 = scmp.ne.s32.totalorder %s112, %s115
      %p124 = scmp.eq.s32.totalorder %s18, 7
      %p125 = por %p123, %p124
      %p126 = scmp.ne.s32.totalorder %s115, %s116
      %p127 = scmp.eq.s32.totalorder %s18, 0
      %p128 = por %p126, %p127
      %p129 = scmp.ne.s32.totalorder %s115, %s116
      %p130 = scmp.eq.s32.totalorder %s19, 7
      %p131 = por %p129, %p130
      %p133 = scmp.ne.s32.totalorder %s116, %s132
      %p134 = scmp.eq.s32.totalorder %s19, 0
      %p135 = por %p133, %p134
      %p136 = scmp.le.s32.totalorder 1, %s13
      %p137 = scmp.lt.s32.totalorder %s13, 9
      %p138 = pnand %p136, %p137
      %p139 = pneg %p138
      // Predicated region
      $region9: #{tpu_custom_call.1} parent=5 // pred_check
        _
      $region10: #{tpu_custom_call.1} parent=5 // pred_check_branch
        %141 = sbr.rel (%p138) target = $region12
      $region11: #{tpu_custom_call.1} parent=5 // pred_region
        %s142 = ssub.s32 %s13, 1
        // Predicated region
        $region13: #{tpu_custom_call.1} parent=11 // pred_check
          %p143 = pneg %p60
        $region14: #{tpu_custom_call.1} parent=11 // pred_check_branch
          %145 = sbr.rel (%p143) target = $region16
        $region15: #{tpu_custom_call.1} parent=11 // pred_region
          _
        $region16: #{tpu_custom_call.1} parent=11 // pred_fallthru
          _
        // Predicated region
        $region17: #{tpu_custom_call.1} parent=11 // pred_check
          %p146 = pneg %p81
        $region18: #{tpu_custom_call.1} parent=11 // pred_check_branch
          %148 = sbr.rel (%p146) target = $region20
        $region19: #{tpu_custom_call.1} parent=11 // pred_region
          _
        $region20: #{tpu_custom_call.1} parent=11 // pred_fallthru
          _
        // Predicated region
        $region21: #{tpu_custom_call.1} parent=11 // pred_check
          %p149 = pneg %p102
        $region22: #{tpu_custom_call.1} parent=11 // pred_check_branch
          %151 = sbr.rel (%p149) target = $region24
        $region23: #{tpu_custom_call.1} parent=11 // pred_region
          _
        $region24: #{tpu_custom_call.1} parent=11 // pred_fallthru
          _
      $region12: #{tpu_custom_call.1} parent=5 // pred_fallthru
        _
      %p152 = scmp.lt.s32.totalorder %s13, 8
      // Predicated region
      $region25: #{tpu_custom_call.1} parent=5 // pred_check
        %p153 = pneg %p152
      $region26: #{tpu_custom_call.1} parent=5 // pred_check_branch
        %155 = sbr.rel (%p153) target = $region28
      $region27: #{tpu_custom_call.1} parent=5 // pred_region
        // Predicated region
        $region29: #{tpu_custom_call.1} parent=27 // pred_check
          %p156 = pneg %p33
        $region30: #{tpu_custom_call.1} parent=27 // pred_check_branch
          %158 = sbr.rel (%p156) target = $region32
        $region31: #{tpu_custom_call.1} parent=27 // pred_region
          %s159 = smul.u32 8, %s13
          %p160 = scmp.lt.s32.totalorder %s159, 63
          %s161 = scalar_select %p160, %s159, 63
          %s162 = smul.addr %s161, 2
          %s163 = smul.addr %s162, 8
          %s164 = scalar_lea.vmem %s0, %s163
          %s165 = smul.u32 8, %s13
        $region32: #{tpu_custom_call.1} parent=27 // pred_fallthru
          _
      $region28: #{tpu_custom_call.1} parent=5 // pred_fallthru
        _
      %p166 = scmp.le.s32.totalorder 1, %s13
      %p167 = scmp.lt.s32.totalorder %s13, 9
      %p168 = pnand %p166, %p167
      %p169 = pneg %p168
      // Predicated region
      $region33: #{tpu_custom_call.1} parent=5 // pred_check
        _
      $region34: #{tpu_custom_call.1} parent=5 // pred_check_branch
        %171 = sbr.rel (%p168) target = $region36
      $region35: #{tpu_custom_call.1} parent=5 // pred_region
        %s172 = ssub.s32 %s13, 1
        %s173 = smul.u32 8, %s18
        %p174 = scmp.lt.s32.totalorder %s173, 63
        %s175 = scalar_select %p174, %s173, 63
        %s176 = smul.addr %s175, 2
        %s177 = smul.addr %s176, 8
        %s178 = scalar_lea.vmem %s0, %s177
        %p179 = pneg %p39
        %p180 = pneg %p36
        %p181 = pneg %p60
        %p182 = pneg %p57
        %p183 = pneg %p81
        %p184 = pneg %p78
        %p185 = pneg %p102
        %p186 = pneg %p99
        %p187 = pneg %p128
        %p188 = pneg %p125
        %s189 = sand.u32 %s115, 1
        %s190 = scalar_lea.sflag [#allocation3], %s189
        %s191 = sand.u32 %s115, 1
        %s192 = smul.addr %s191, 64
        %s193 = scalar_lea.vmem [#allocation2], %s192
        %s194 = smul.u32 8, %s18
        %p195 = scmp.lt.s32.totalorder %s194, 63
        %s196 = scalar_select %p195, %s194, 63
        %s197 = smul.addr %s196, 2
        %s198 = smul.addr %s197, 8
        %s199 = scalar_lea.vmem %s0, %s198
        %s200 = smul.u32 8, %s18
        %s201 = smul.u32 8, %s18
        %v202 = vld [vmem:[%s199] sm:$0xff]
        %v203 = vld [vmem:[%s199 + $0x8] sm:$0xff]
        %v204 = vld [vmem:[%s199 + $0x10] sm:$0xff]
        %v205 = vld [vmem:[%s199 + $0x18] sm:$0xff]
        %v206 = vld [vmem:[%s199 + $0x20] sm:$0xff]
        %v207 = vld [vmem:[%s199 + $0x28] sm:$0xff]
        %v208 = vld [vmem:[%s199 + $0x30] sm:$0xff]
        %v209 = vld [vmem:[%s199 + $0x38] sm:$0xff]
        %v210 = vld [vmem:[%s199 + $0x40] sm:$0xff]
        %v211 = vld [vmem:[%s199 + $0x48] sm:$0xff]
        %v212 = vld [vmem:[%s199 + $0x50] sm:$0xff]
        %v213 = vld [vmem:[%s199 + $0x58] sm:$0xff]
        %v214 = vld [vmem:[%s199 + $0x60] sm:$0xff]
        %v215 = vld [vmem:[%s199 + $0x68] sm:$0xff]
        %v216 = vld [vmem:[%s199 + $0x70] sm:$0xff]
        %v217 = vld [vmem:[%s199 + $0x78] sm:$0xff]
        %v218 = vld [vmem:[%s1] sm:$0xff]
        %v219 = vld [vmem:[%s1 + $0x8] sm:$0xff]
        %v220 = vld [vmem:[%s1 + $0x10] sm:$0xff]
        %v221 = vld [vmem:[%s1 + $0x18] sm:$0xff]
        %v222 = vld [vmem:[%s1 + $0x20] sm:$0xff]
        %v223 = vld [vmem:[%s1 + $0x28] sm:$0xff]
        %v224 = vld [vmem:[%s1 + $0x30] sm:$0xff]
        %v225 = vld [vmem:[%s1 + $0x38] sm:$0xff]
        %v226 = vld [vmem:[%s1 + $0x40] sm:$0xff]
        %v227 = vld [vmem:[%s1 + $0x48] sm:$0xff]
        %v228 = vld [vmem:[%s1 + $0x50] sm:$0xff]
        %v229 = vld [vmem:[%s1 + $0x58] sm:$0xff]
        %v230 = vld [vmem:[%s1 + $0x60] sm:$0xff]
        %v231 = vld [vmem:[%s1 + $0x68] sm:$0xff]
        %v232 = vld [vmem:[%s1 + $0x70] sm:$0xff]
        %v233 = vld [vmem:[%s1 + $0x78] sm:$0xff]
        %v234 = vld [vmem:[%s1 + $0x80] sm:$0xff]
        %v235 = vld [vmem:[%s1 + $0x88] sm:$0xff]
        %v236 = vld [vmem:[%s1 + $0x90] sm:$0xff]
        %v237 = vld [vmem:[%s1 + $0x98] sm:$0xff]
        %v238 = vld [vmem:[%s2] sm:$0x1]
        %v240 = vperm.slane %v238, 0
        %vm242 = vcmask 261120
        %v244 = vsel %vm242, %v203, 0
        %v247 = vsel %vm242, %v205, 0
        %v250 = vsel %vm242, %v207, 0
        %v253 = vsel %vm242, %v209, 0
        %v256 = vsel %vm242, %v211, 0
        %v259 = vsel %vm242, %v213, 0
        %v262 = vsel %vm242, %v215, 0
        %v265 = vsel %vm242, %v217, 0
        %267 = vmatpush.msra.mxu0 %v233
        %268 = vmatpush.msra.mxu0 %v232
        %269 = vmatpush.msra.mxu0 %v231
        %270 = vmatpush.msra.mxu0 %v230
        %271 = vmatpush.msra.mxu0 %v229
        %272 = vmatpush.msra.mxu0 %v228
        %273 = vmatpush.msra.mxu0 %v227
        %274 = vmatpush.msra.mxu0 %v226
        %275 = vmatpush.msra.mxu0 %v225
        %276 = vmatpush.msra.mxu0 %v224
        %277 = vmatpush.msra.mxu0 %v223
        %278 = vmatpush.msra.mxu0 %v222
        %279 = vmatpush.msra.mxu0 %v221
        %280 = vmatpush.msra.mxu0 %v220
        %281 = vmatpush.msra.mxu0 %v219
        %282 = vmatpush.msra.mxu0 %v218
        %283 = vmatmul.f32.gmra.mxu0 %v202
        %v284 = vpop.f32.mrf.mxu0
        %v285 = vadd.f32 %v240, %v284
        %286 = vmatmul.f32.gmra.mxu0 %v204
        %v287 = vpop.f32.mrf.mxu0
        %v288 = vadd.f32 %v240, %v287
        %289 = vmatmul.f32.gmra.mxu0 %v206
        %v290 = vpop.f32.mrf.mxu0
        %v291 = vadd.f32 %v240, %v290
        %292 = vmatmul.f32.gmra.mxu0 %v208
        %v293 = vpop.f32.mrf.mxu0
        %v294 = vadd.f32 %v240, %v293
        %295 = vmatmul.f32.gmra.mxu0 %v210
        %v296 = vpop.f32.mrf.mxu0
        %v297 = vadd.f32 %v240, %v296
        %298 = vmatmul.f32.gmra.mxu0 %v212
        %v299 = vpop.f32.mrf.mxu0
        %v300 = vadd.f32 %v240, %v299
        %301 = vmatmul.f32.gmra.mxu0 %v214
        %v302 = vpop.f32.mrf.mxu0
        %v303 = vadd.f32 %v240, %v302
        %304 = vmatmul.f32.gmra.mxu0 %v216
        %v305 = vpop.f32.mrf.mxu0
        %v306 = vadd.f32 %v240, %v305
        %307 = vdwg.mxu0
        %308 = vmatpush.msra.mxu0 0.0
        %309 = vmatpush.msra.mxu0 0.0
        %310 = vmatpush.msra.mxu0 0.0
        %311 = vmatpush.msra.mxu0 0.0
        %312 = vmatpush.msra.mxu0 0.0
        %313 = vmatpush.msra.mxu0 0.0
        %314 = vmatpush.msra.mxu0 0.0
        %315 = vmatpush.msra.mxu0 0.0
        %316 = vmatpush.msra.mxu0 0.0
        %317 = vmatpush.msra.mxu0 0.0
        %318 = vmatpush.msra.mxu0 0.0
        %319 = vmatpush.msra.mxu0 0.0
        %320 = vmatpush.msra.mxu0 %v237
        %321 = vmatpush.msra.mxu0 %v236
        %322 = vmatpush.msra.mxu0 %v235
        %323 = vmatpush.msra.mxu0 %v234
        %324 = vmatmul.f32.gmra.mxu0 %v244
        %v325 = vpop.f32.mrf.mxu0
        %v326 = vadd.f32 %v285, %v325
        %327 = vmatmul.f32.gmra.mxu0 %v247
        %v328 = vpop.f32.mrf.mxu0
        %v329 = vadd.f32 %v288, %v328
        %330 = vmatmul.f32.gmra.mxu0 %v250
        %v331 = vpop.f32.mrf.mxu0
        %v332 = vadd.f32 %v291, %v331
        %333 = vmatmul.f32.gmra.mxu0 %v253
        %v334 = vpop.f32.mrf.mxu0
        %v335 = vadd.f32 %v294, %v334
        %336 = vmatmul.f32.gmra.mxu0 %v256
        %v337 = vpop.f32.mrf.mxu0
        %v338 = vadd.f32 %v297, %v337
        %339 = vmatmul.f32.gmra.mxu0 %v259
        %v340 = vpop.f32.mrf.mxu0
        %v341 = vadd.f32 %v300, %v340
        %342 = vmatmul.f32.gmra.mxu0 %v262
        %v343 = vpop.f32.mrf.mxu0
        %v344 = vadd.f32 %v303, %v343
        %345 = vmatmul.f32.gmra.mxu0 %v265
        %v346 = vpop.f32.mrf.mxu0
        %v347 = vadd.f32 %v306, %v346
        %348 = vdwg.mxu0
        %v349 = vmax.f32 %v326, 0.0
        %v350 = vmax.f32 %v329, 0.0
        %v351 = vmax.f32 %v332, 0.0
        %v352 = vmax.f32 %v335, 0.0
        %v353 = vmax.f32 %v338, 0.0
        %v354 = vmax.f32 %v341, 0.0
        %v355 = vmax.f32 %v344, 0.0
        %v356 = vmax.f32 %v347, 0.0
        %v357 = vld [vmem:[%s3] sm:$0xff]
        %v358 = vld [vmem:[%s3 + $0x8] sm:$0xff]
        %v359 = vld [vmem:[%s3 + $0x10] sm:$0xff]
        %v360 = vld [vmem:[%s3 + $0x18] sm:$0xff]
        %v361 = vld [vmem:[%s3 + $0x20] sm:$0xff]
        %v362 = vld [vmem:[%s3 + $0x28] sm:$0xff]
        %v363 = vld [vmem:[%s3 + $0x30] sm:$0xff]
        %v364 = vld [vmem:[%s3 + $0x38] sm:$0xff]
        %v365 = vld [vmem:[%s3 + $0x40] sm:$0xff]
        %v366 = vld [vmem:[%s3 + $0x48] sm:$0xff]
        %v367 = vld [vmem:[%s3 + $0x50] sm:$0xff]
        %v368 = vld [vmem:[%s3 + $0x58] sm:$0xff]
        %v369 = vld [vmem:[%s3 + $0x60] sm:$0xff]
        %v370 = vld [vmem:[%s3 + $0x68] sm:$0xff]
        %v371 = vld [vmem:[%s3 + $0x70] sm:$0xff]
        %v372 = vld [vmem:[%s3 + $0x78] sm:$0xff]
        %373 = vmatpush.msra.mxu0 %v372
        %374 = vmatpush.msra.mxu0 %v371
        %375 = vmatpush.msra.mxu0 %v370
        %376 = vmatpush.msra.mxu0 %v369
        %377 = vmatpush.msra.mxu0 %v368
        %378 = vmatpush.msra.mxu0 %v367
        %379 = vmatpush.msra.mxu0 %v366
        %380 = vmatpush.msra.mxu0 %v365
        %381 = vmatpush.msra.mxu0 %v364
        %382 = vmatpush.msra.mxu0 %v363
        %383 = vmatpush.msra.mxu0 %v362
        %384 = vmatpush.msra.mxu0 %v361
        %385 = vmatpush.msra.mxu0 %v360
        %386 = vmatpush.msra.mxu0 %v359
        %387 = vmatpush.msra.mxu0 %v358
        %388 = vmatpush.msra.mxu0 %v357
        %389 = vmatmul.f32.gmra.mxu0 %v349
        %v390 = vpop.f32.mrf.mxu0
        %v391 = vadd.f32 0.0, %v390
        %392 = vmatmul.f32.gmra.mxu0 %v350
        %v393 = vpop.f32.mrf.mxu0
        %v394 = vadd.f32 0.0, %v393
        %395 = vmatmul.f32.gmra.mxu0 %v351
        %v396 = vpop.f32.mrf.mxu0
        %v397 = vadd.f32 0.0, %v396
        %398 = vmatmul.f32.gmra.mxu0 %v352
        %v399 = vpop.f32.mrf.mxu0
        %v400 = vadd.f32 0.0, %v399
        %401 = vmatmul.f32.gmra.mxu0 %v353
        %v402 = vpop.f32.mrf.mxu0
        %v403 = vadd.f32 0.0, %v402
        %404 = vmatmul.f32.gmra.mxu0 %v354
        %v405 = vpop.f32.mrf.mxu0
        %v406 = vadd.f32 0.0, %v405
        %407 = vmatmul.f32.gmra.mxu0 %v355
        %v408 = vpop.f32.mrf.mxu0
        %v409 = vadd.f32 0.0, %v408
        %410 = vmatmul.f32.gmra.mxu0 %v356
        %v411 = vpop.f32.mrf.mxu0
        %v412 = vadd.f32 0.0, %v411
        %413 = vdwg.mxu0
        %v414 = vadd.f32 %v326, %v391
        %v415 = vadd.f32 %v329, %v394
        %v416 = vadd.f32 %v332, %v397
        %v417 = vadd.f32 %v335, %v400
        %v418 = vadd.f32 %v338, %v403
        %v419 = vadd.f32 %v341, %v406
        %v420 = vadd.f32 %v344, %v409
        %v421 = vadd.f32 %v347, %v412
        %422 = vst [vmem:[%s193] sm:$0xff] %v414
        %423 = vst [vmem:[%s193 + $0x8] sm:$0xff] %v415
        %424 = vst [vmem:[%s193 + $0x10] sm:$0xff] %v416
        %425 = vst [vmem:[%s193 + $0x18] sm:$0xff] %v417
        %426 = vst [vmem:[%s193 + $0x20] sm:$0xff] %v418
        %427 = vst [vmem:[%s193 + $0x28] sm:$0xff] %v419
        %428 = vst [vmem:[%s193 + $0x30] sm:$0xff] %v420
        %429 = vst [vmem:[%s193 + $0x38] sm:$0xff] %v421
        %s430 = sand.u32 %s115, 1
        %s431 = scalar_lea.sflag [#allocation3], %s430
        %s432 = sand.u32 %s115, 1
        %s433 = smul.addr %s432, 64
        %s434 = scalar_lea.vmem [#allocation2], %s433
        // Predicated region
        $region37: #{tpu_custom_call.1} parent=35 // pred_check
          %p435 = pneg %p125
        $region38: #{tpu_custom_call.1} parent=35 // pred_check_branch
          %437 = sbr.rel (%p435) target = $region40
        $region39: #{tpu_custom_call.1} parent=35 // pred_region
          %s438 = smul.u32 8, %s18
          %440 = vsyncadd %s431, 0
          %s441 = smul.addr %s438, 8
          %s442 = scalar_lea.hbm %s4, %s441
          %s443 = sshll.u32 %s434, 4
          %s444 = int_to_ptr.vmem [resolvable:$true] %s443
          %s445 = sshll.u32 %s442, 4
          %s446 = int_to_ptr.hbm [resolvable:$true] %s445
          %451 = dma.vmem_to_hbm [thread:$0]  %s444, 1024, %s446, %s431, 128, 128, 8
        $region40: #{tpu_custom_call.1} parent=35 // pred_fallthru
          _
      $region36: #{tpu_custom_call.1} parent=5 // pred_fallthru
        _
      %p452 = scmp.le.s32.totalorder 2, %s13
      // Predicated region
      $region41: #{tpu_custom_call.1} parent=5 // pred_check
        %p453 = pneg %p452
      $region42: #{tpu_custom_call.1} parent=5 // pred_check_branch
        %455 = sbr.rel (%p453) target = $region44
      $region43: #{tpu_custom_call.1} parent=5 // pred_region
        %s456 = ssub.s32 %s13, 2
        // Predicated region
        $region45: #{tpu_custom_call.1} parent=43 // pred_check
          %p457 = pneg %p131
        $region46: #{tpu_custom_call.1} parent=43 // pred_check_branch
          %459 = sbr.rel (%p457) target = $region48
        $region47: #{tpu_custom_call.1} parent=43 // pred_region
          %s460 = sand.u32 %s116, 1
          %s461 = scalar_lea.sflag [#allocation3], %s460
          %s462 = sand.u32 %s116, 1
          %s463 = smul.addr %s462, 64
          %s464 = scalar_lea.vmem [#allocation2], %s463
          %466 = dma.done %s461, 1024
        $region48: #{tpu_custom_call.1} parent=43 // pred_fallthru
          _
      $region44: #{tpu_custom_call.1} parent=5 // pred_fallthru
        _
    $region6: #{tpu_custom_call.1} parent=1 // loop_footer
      %s17 = sadd.s32 1, %s13
    $region7: #{tpu_custom_call.1} parent=1 // loop_footer_branch
      %12 = sbr.rel target = $region3
    $region8: #{tpu_custom_call.1} parent=1 // loop_exit
      _
    %467 = vsyncpa [#allocation3], 1
    %s468 = scalar_lea.sflag [#allocation3], 1
    %469 = vsyncpa %s468, 1

</llo_original>
